<compile_context>
chip_gen: v7x
topology: tpu7x:2x2x1
jax: 0.10.0
libtpu: 0.0.40
codegen_flags: <defaults>
</compile_context>

<pallas_src>
import functools
import math

import numpy as np
import jax
import jax.numpy as jnp
from jax.experimental import pallas as pl
from jax.experimental.pallas import tpu as pltpu


VMEM_LIMIT_BYTES = 48 * 1024 * 1024  # above v6e/v7x default scoped 32MiB, < v7x physical


def find_multiple(n: int, k: int) -> int:
    if n % k == 0:
        return n
    return n + k - n % k


# --------------------------------------------------------------------------
# Generic linear kernel:  y = x @ w_t + b   (w_t already (K, O), bf16)
# --------------------------------------------------------------------------
def _linear_kernel(x_ref, w_ref, b_ref, o_ref):
    acc = jnp.dot(x_ref[...], w_ref[...],
                  preferred_element_type=jnp.float32) + b_ref[...]
    o_ref[...] = acc.astype(o_ref.dtype)


def pallas_linear(x, w_t, b, out_dtype=jnp.float32, block_m=128):
    """x (M, K) @ w_t (K, O) + b (1, O) -> (M, O); bf16 inputs, f32 accumulate."""
    M, K = x.shape
    O = w_t.shape[1]
    bm = block_m if (M % block_m == 0) else M
    return pl.pallas_call(
        _linear_kernel,
        out_shape=jax.ShapeDtypeStruct((M, O), out_dtype),
        grid=(M // bm,),
        in_specs=[
            pl.BlockSpec((bm, K), lambda i: (i, 0)),
            pl.BlockSpec((K, O), lambda i: (0, 0)),
            pl.BlockSpec((1, O), lambda i: (0, 0)),
        ],
        out_specs=pl.BlockSpec((bm, O), lambda i: (i, 0)),
        compiler_params=pltpu.CompilerParams(
            dimension_semantics=("parallel",),
            vmem_limit_bytes=VMEM_LIMIT_BYTES),
    )(x.astype(jnp.bfloat16), w_t, b)


# --------------------------------------------------------------------------
# LLaMABlock kernel (one batch element per grid step, head-batched attention)
# --------------------------------------------------------------------------
def _llama_block_kernel(x_ref, mod_ref, qkv_w_ref, qkv_b_ref, proj_w_ref,
                        proj_b_ref, fc1_w_ref, fc2_w_ref, cproj_w_ref,
                        cos_ref, sin_ref, o_ref, *, num_heads):
    T = x_ref.shape[1]
    D = x_ref.shape[2]
    hd = D // num_heads
    hd2 = hd // 2
    Dh = D // 2
    scale = 1.0 / math.sqrt(hd)
    eps = 1e-6

    x = x_ref[0].astype(jnp.float32)        # (T, D) residual stream in fp32
    m = mod_ref[0]                          # (1, 6D) fp32
    shift_msa = m[:, 0 * D:1 * D]
    scale_msa = m[:, 1 * D:2 * D]
    gate_msa = m[:, 2 * D:3 * D]
    shift_mlp = m[:, 3 * D:4 * D]
    scale_mlp = m[:, 4 * D:5 * D]
    gate_mlp = m[:, 5 * D:6 * D]

    def layer_norm(v):                      # LayerNorm(eps=1e-6, no affine), fp32
        mu = jnp.mean(v, axis=-1, keepdims=True)
        d = v - mu
        var = jnp.mean(d * d, axis=-1, keepdims=True)
        return d * jax.lax.rsqrt(var + eps)

    # ---------------- attention branch ----------------
    h = layer_norm(x) * (1.0 + scale_msa) + shift_msa
    qkv = jnp.dot(h.astype(jnp.bfloat16), qkv_w_ref[...],
                  preferred_element_type=jnp.float32) + qkv_b_ref[...]
    q = qkv[:, 0:D]                         # per-head [real | imag] split layout
    k = qkv[:, D:2 * D]
    v = qkv[:, 2 * D:3 * D]                 # original (unpermuted) layout

    cos = cos_ref[...]                      # (T, D/2) fp32
    sin = sin_ref[...]

    def rope(u):                            # 2-D RoPE on split layout: pure VPU math
        u_re = u[:, :Dh]
        u_im = u[:, Dh:]
        return (u_re * cos - u_im * sin,    # rotated real half  (T, D/2)
                u_im * cos + u_re * sin)    # rotated imag half  (T, D/2)

    q_re, q_im = rope(q)
    k_re, k_im = rope(k)

    def head_stack(u, width):               # (T, nh*width) -> (nh, T, width)
        return jnp.stack(
            [u[:, i * width:(i + 1) * width] for i in range(num_heads)], axis=0)

    qre = head_stack(q_re, hd2).astype(jnp.bfloat16)
    qim = head_stack(q_im, hd2).astype(jnp.bfloat16)
    kre = head_stack(k_re, hd2).astype(jnp.bfloat16)
    kim = head_stack(k_im, hd2).astype(jnp.bfloat16)
    vh = head_stack(v, hd).astype(jnp.bfloat16)          # (nh, T, hd)

    # scores over each head's dims = re-part + im-part contributions
    s = (jnp.einsum("hqc,hkc->hqk", qre, kre, preferred_element_type=jnp.float32)
         + jnp.einsum("hqc,hkc->hqk", qim, kim, preferred_element_type=jnp.float32))
    s = s * scale
    s = s - jnp.max(s, axis=-1, keepdims=True)
    p = jnp.exp(s)
    p = p * pl.reciprocal(jnp.sum(p, axis=-1, keepdims=True), approx=True)

    o_heads = jnp.einsum("hqk,hkd->hqd", p.astype(jnp.bfloat16), vh,
                         preferred_element_type=jnp.float32)          # (nh, T, hd)

    # output projection: head-batched (hd -> D) matmul + sum over heads
    # (mathematically identical to concat-heads @ (D, D) projection)
    attn = jnp.sum(
        jnp.einsum("hqd,hdo->hqo", o_heads.astype(jnp.bfloat16), proj_w_ref[...],
                   preferred_element_type=jnp.float32),
        axis=0) + proj_b_ref[...]
    x = x + gate_msa * attn

    # ---------------- LLaMA MLP branch (SwiGLU) ----------------
    h2 = (layer_norm(x) * (1.0 + scale_mlp) + shift_mlp).astype(jnp.bfloat16)
    a = jnp.dot(h2, fc1_w_ref[...], preferred_element_type=jnp.float32)
    b2 = jnp.dot(h2, fc2_w_ref[...], preferred_element_type=jnp.float32)
    g = (a * jax.nn.sigmoid(a)) * b2                                   # silu(fc1)*fc2
    mlp = jnp.dot(g.astype(jnp.bfloat16), cproj_w_ref[...],
                  preferred_element_type=jnp.float32)
    x = x + gate_mlp * mlp

    o_ref[0] = x.astype(jnp.bfloat16)


def llama_block(x, mod, blk, rope, num_heads):
    B, T, D = x.shape
    Nh = blk["fc1_w_t"].shape[1]
    Dh = D // 2
    hd = D // num_heads
    kern = functools.partial(_llama_block_kernel, num_heads=num_heads)
    return pl.pallas_call(
        kern,
        out_shape=jax.ShapeDtypeStruct((B, T, D), jnp.bfloat16),
        grid=(B,),
        in_specs=[
            pl.BlockSpec((1, T, D), lambda b: (b, 0, 0)),          # x (bf16)
            pl.BlockSpec((1, 1, 6 * D), lambda b: (b, 0, 0)),      # adaLN mod (f32)
            pl.BlockSpec((D, 3 * D), lambda b: (0, 0)),            # qkv W^T (bf16)
            pl.BlockSpec((1, 3 * D), lambda b: (0, 0)),            # qkv bias (f32)
            pl.BlockSpec((num_heads, hd, D), lambda b: (0, 0, 0)), # proj W grouped by head
            pl.BlockSpec((1, D), lambda b: (0, 0)),                # proj bias
            pl.BlockSpec((D, Nh), lambda b: (0, 0)),               # fc1 W^T
            pl.BlockSpec((D, Nh), lambda b: (0, 0)),               # fc2 W^T
            pl.BlockSpec((Nh, D), lambda b: (0, 0)),               # c_proj W^T
            pl.BlockSpec((T, Dh), lambda b: (0, 0)),               # rope cos (per-head half)
            pl.BlockSpec((T, Dh), lambda b: (0, 0)),               # rope sin
        ],
        out_specs=pl.BlockSpec((1, T, D), lambda b: (b, 0, 0)),
        compiler_params=pltpu.CompilerParams(
            dimension_semantics=("parallel",),
            vmem_limit_bytes=VMEM_LIMIT_BYTES),
    )(
        x.astype(jnp.bfloat16),
        mod.reshape(B, 1, 6 * D).astype(jnp.float32),
        blk["qkv_w_t"], blk["qkv_b"], blk["proj_w3"], blk["proj_b"],
        blk["fc1_w_t"], blk["fc2_w_t"], blk["cproj_w_t"],
        rope["cos"], rope["sin"],
    )


# --------------------------------------------------------------------------
# FinalLayer kernel: modulated LayerNorm + linear
# --------------------------------------------------------------------------
def _final_layer_kernel(x_ref, mod_ref, wlin_ref, blin_ref, o_ref):
    D = x_ref.shape[2]
    x = x_ref[0].astype(jnp.float32)
    m = mod_ref[0]
    shift = m[:, 0:D]
    scale = m[:, D:2 * D]
    mu = jnp.mean(x, axis=-1, keepdims=True)
    d = x - mu
    var = jnp.mean(d * d, axis=-1, keepdims=True)
    h = (d * jax.lax.rsqrt(var + 1e-6)) * (1.0 + scale) + shift
    o_ref[0] = (
        jnp.dot(h.astype(jnp.bfloat16), wlin_ref[...],
                preferred_element_type=jnp.float32) + blin_ref[...]
    )


def final_layer(x, mod2, w_lin_t, b_lin):
    B, T, D = x.shape
    O = w_lin_t.shape[1]
    return pl.pallas_call(
        _final_layer_kernel,
        out_shape=jax.ShapeDtypeStruct((B, T, O), jnp.float32),
        grid=(B,),
        in_specs=[
            pl.BlockSpec((1, T, D), lambda b: (b, 0, 0)),
            pl.BlockSpec((1, 1, 2 * D), lambda b: (b, 0, 0)),
            pl.BlockSpec((D, O), lambda b: (0, 0)),
            pl.BlockSpec((1, O), lambda b: (0, 0)),
        ],
        out_specs=pl.BlockSpec((1, T, O), lambda b: (b, 0, 0)),
        compiler_params=pltpu.CompilerParams(
            dimension_semantics=("parallel",),
            vmem_limit_bytes=VMEM_LIMIT_BYTES),
    )(
        x.astype(jnp.bfloat16),
        mod2.reshape(B, 1, 2 * D).astype(jnp.float32),
        w_lin_t, b_lin,
    )


# --------------------------------------------------------------------------
# RoPE constants (matching precompute_freqs_cis_2d / apply_rotary_emb) and the
# Q/K channel permutation that turns interleaved (re, im) pairs into a
# per-head [re half | im half] split layout.
# --------------------------------------------------------------------------
def make_rope_constants(num_tokens, hidden, num_heads, theta=10000.0):
    hd = hidden // num_heads
    assert hd % 4 == 0
    hd2 = hd // 2
    Hg = int(num_tokens ** 0.5)
    pos = np.arange(num_tokens)
    x_pos = pos % Hg
    y_pos = pos // Hg
    nfreq = hd // 4
    freqs = 1.0 / (theta ** (np.arange(0, hd, 4)[:nfreq].astype(np.float32) / hd))
    x_ang = np.outer(x_pos, freqs).astype(np.float32)
    y_ang = np.outer(y_pos, freqs).astype(np.float32)
    ang = np.stack([x_ang, y_ang], axis=-1).reshape(num_tokens, hd2)   # (T, hd/2)
    cos = np.tile(np.cos(ang), (1, num_heads)).astype(np.float32)      # (T, D/2)
    sin = np.tile(np.sin(ang), (1, num_heads)).astype(np.float32)
    return {"cos": jnp.asarray(cos), "sin": jnp.asarray(sin)}


def make_qk_split_perm(hidden, num_heads):
    hd = hidden // num_heads
    hd2 = hd // 2
    perm = np.zeros(hidden, np.int32)
    for h in range(num_heads):
        for j in range(hd2):
            perm[h * hd2 + j] = h * hd + 2 * j                 # real part -> first half
            perm[hidden // 2 + h * hd2 + j] = h * hd + 2 * j + 1  # imag -> second half
    return jnp.asarray(perm)


# --------------------------------------------------------------------------
# Deterministic parameter init (shapes from DiTLLaMA.__init__, torch layout)
# --------------------------------------------------------------------------
def init_params(key, cfg):
    D = cfg["hidden"]
    C = cfg["in_channels"]
    p = cfg["patch_size"]
    out_ch = cfg["out_channels"]
    freq_dim = 256
    nh_mlp = find_multiple(int(2 * (4 * D) / 3), 256)

    keys = iter(jax.random.split(key, 32 + 16 * cfg["depth"]))

    def nrm(shape, std=0.02):
        return std * jax.random.normal(next(keys), shape, jnp.float32)

    params = {
        "patch_w": nrm((D, C * p * p)),                    # conv weight reshaped
        "patch_b": jnp.zeros((D,), jnp.float32),
        "t_w1": nrm((D, freq_dim)),
        "t_b1": jnp.zeros((D,), jnp.float32),
        "t_w2": nrm((D, D)),
        "t_b2": jnp.zeros((D,), jnp.float32),
        "y_table": nrm((cfg["num_classes"] + 1, D)),       # +1 for CFG null class
        "final_ada_w": nrm((2 * D, D)),
        "final_ada_b": jnp.zeros((2 * D,), jnp.float32),
        "final_lin_w": nrm((p * p * out_ch, D)),
        "final_lin_b": jnp.zeros((p * p * out_ch,), jnp.float32),
        "blocks": [],
    }
    # NOTE: random (not DiT zero-) init for adaLN / final linear so kernels do real work.
    for _ in range(cfg["depth"]):
        params["blocks"].append({
            "ada_w": nrm((6 * D, D)),
            "ada_b": jnp.zeros((6 * D,), jnp.float32),
            "qkv_w": nrm((3 * D, D)),
            "qkv_b": jnp.zeros((3 * D,), jnp.float32),
            "proj_w": nrm((D, D)),
            "proj_b": jnp.zeros((D,), jnp.float32),
            "fc1_w": nrm((nh_mlp, D)),
            "fc2_w": nrm((nh_mlp, D)),
            "cproj_w": nrm((D, nh_mlp)),
        })
    return params


def prepare_params(raw, cfg):
    """Pre-transpose to (K, O), pre-cast to bf16, apply the Q/K RoPE split
    permutation, group the output projection by head, and fuse all adaLN
    projection weights into one matrix.  Done once at init."""
    D = cfg["hidden"]
    nh = cfg["num_heads"]
    hd = D // nh
    perm = make_qk_split_perm(D, nh)
    bf16 = jnp.bfloat16
    f32 = jnp.float32

    prep = {
        "patch_w_t": jnp.transpose(raw["patch_w"]).astype(bf16),
        "patch_b": raw["patch_b"].reshape(1, -1).astype(f32),
        "t_w1_t": jnp.transpose(raw["t_w1"]).astype(bf16),
        "t_b1": raw["t_b1"].reshape(1, -1).astype(f32),
        "t_w2_t": jnp.transpose(raw["t_w2"]).astype(bf16),
        "t_b2": raw["t_b2"].reshape(1, -1).astype(f32),
        "y_table": raw["y_table"].astype(f32),
        "final_lin_w_t": jnp.transpose(raw["final_lin_w"]).astype(bf16),
        "final_lin_b": raw["final_lin_b"].reshape(1, -1).astype(f32),
    }
    # fused adaLN projections: [block0 6D | block1 6D | ... | final 2D]
    cond_w = jnp.concatenate([blk["ada_w"] for blk in raw["blocks"]]
                             + [raw["final_ada_w"]], axis=0)
    cond_b = jnp.concatenate([blk["ada_b"] for blk in raw["blocks"]]
                             + [raw["final_ada_b"]], axis=0)
    prep["cond_w_t"] = jnp.transpose(cond_w).astype(bf16)
    prep["cond_b"] = cond_b.reshape(1, -1).astype(f32)

    blocks = []
    for blk in raw["blocks"]:
        wq, wk, wv = blk["qkv_w"][:D], blk["qkv_w"][D:2 * D], blk["qkv_w"][2 * D:]
        bq, bk, bv = blk["qkv_b"][:D], blk["qkv_b"][D:2 * D], blk["qkv_b"][2 * D:]
        qkv_w_p = jnp.concatenate([wq[perm], wk[perm], wv], axis=0)
        qkv_b_p = jnp.concatenate([bq[perm], bk[perm], bv], axis=0)
        blocks.append({
            "qkv_w_t": jnp.transpose(qkv_w_p).astype(bf16),            # (D, 3D)
            "qkv_b": qkv_b_p.reshape(1, 3 * D).astype(f32),
            "proj_w3": jnp.transpose(blk["proj_w"]).reshape(nh, hd, D).astype(bf16),
            "proj_b": blk["proj_b"].reshape(1, D).astype(f32),
            "fc1_w_t": jnp.transpose(blk["fc1_w"]).astype(bf16),        # (D, Nh)
            "fc2_w_t": jnp.transpose(blk["fc2_w"]).astype(bf16),
            "cproj_w_t": jnp.transpose(blk["cproj_w"]).astype(bf16),    # (Nh, D)
        })
    prep["blocks"] = blocks
    return prep


# --------------------------------------------------------------------------
# Full DiTLLaMA forward
# --------------------------------------------------------------------------
def dit_llama_forward(prep, rope, cfg, x_img, t, y):
    B, C, H, W = x_img.shape
    p = cfg["patch_size"]
    D = cfg["hidden"]
    nh = cfg["num_heads"]
    depth = cfg["depth"]
    Hp, Wp = H // p, W // p
    T = Hp * Wp

    # PatchEmbed: NCHW conv (stride==kernel==p) == patch flatten + matmul
    xp = (x_img.reshape(B, C, Hp, p, Wp, p)
               .transpose(0, 2, 4, 1, 3, 5)
               .reshape(B * T, C * p * p))
    x = pallas_linear(xp, prep["patch_w_t"], prep["patch_b"],
                      out_dtype=jnp.bfloat16).reshape(B, T, D)
    # NOTE: DiTLLaMA.forward does NOT add pos_embed (RoPE is used instead).

    # TimestepEmbedder
    half = 128
    freqs = jnp.exp(-math.log(10000.0) * jnp.arange(half, dtype=jnp.float32) / half)
    args = t.astype(jnp.float32)[:, None] * freqs[None, :]
    t_freq = jnp.concatenate([jnp.cos(args), jnp.sin(args)], axis=-1)     # (B, 256)
    h1 = pallas_linear(t_freq, prep["t_w1_t"], prep["t_b1"])
    h1 = h1 * jax.nn.sigmoid(h1)                                          # SiLU
    t_emb = pallas_linear(h1, prep["t_w2_t"], prep["t_b2"])

    # LabelEmbedder (eval mode)
    # TODO(synk): classifier-free-guidance label dropout is RNG-driven (training mode); skipped.
    y_emb = prep["y_table"][y]

    c = t_emb + y_emb
    c_silu = c * jax.nn.sigmoid(c)                                        # adaLN SiLU

    # all per-block adaLN projections + final adaLN fused into one matmul
    mods = pallas_linear(c_silu, prep["cond_w_t"], prep["cond_b"])        # (B, depth*6D+2D)

    for i, blk in enumerate(prep["blocks"]):
        mod_i = mods[:, i * 6 * D:(i + 1) * 6 * D]
        x = llama_block(x, mod_i, blk, rope, nh)

    mod_f = mods[:, depth * 6 * D:]
    xf = final_layer(x, mod_f, prep["final_lin_w_t"], prep["final_lin_b"])

    # unpatchify -> (N, C_out, H, W)
    c_out = cfg["out_channels"]
    xf = xf.reshape(B, Hp, Wp, p, p, c_out)
    xf = jnp.einsum("nhwpqc->nchpwq", xf)
    return xf.reshape(B, c_out, Hp * p, Wp * p)


if __name__ == "__main__":
    cfg = dict(input_size=16, patch_size=2, in_channels=4, hidden=64,
               depth=2, num_heads=4, num_classes=10, learn_sigma=True)
    cfg["out_channels"] = cfg["in_channels"] * 2 if cfg["learn_sigma"] else cfg["in_channels"]

    key = jax.random.PRNGKey(0)
    kp, kx = jax.random.split(key)
    raw_params = init_params(kp, cfg)
    prep = prepare_params(raw_params, cfg)

    T = (cfg["input_size"] // cfg["patch_size"]) ** 2
    rope = make_rope_constants(T, cfg["hidden"], cfg["num_heads"])

    B = 2
    x = jax.random.normal(
        kx, (B, cfg["in_channels"], cfg["input_size"], cfg["input_size"]), jnp.float32)
    t = jnp.array([37.0, 512.0], jnp.float32)
    y = jnp.array([1, 7], jnp.int32)

    out = dit_llama_forward(prep, rope, cfg, x, t, y)
    out = jax.block_until_ready(out)

    assert out.shape == (B, cfg["out_channels"], cfg["input_size"], cfg["input_size"])
    assert bool(jnp.all(jnp.isfinite(out)))
    print("KERNEL_OK")
</pallas_src>

<mosaic_0001>
module attributes {stable_mosaic.version = 11 : i64} {
  func.func @_linear_kernel(%arg0: i32, %arg1: memref<128x16xbf16, #tpu.memory_space<vmem>>, %arg2: memref<16x64xbf16, #tpu.memory_space<vmem>>, %arg3: memref<1x64xf32, #tpu.memory_space<vmem>>, %arg4: memref<128x64xbf16, #tpu.memory_space<vmem>>) attributes {dimension_semantics = [#tpu.dimension_semantics<parallel>], iteration_bounds = array<i64: 1>, scalar_prefetch = 0 : i64, scratch_operands = 0 : i64, tpu.core_type = #tpu.core_type<tc>, window_params = [{transform_indices = @transform_0, window_bounds = array<i64: 128, 16>}, {pipeline_mode = #tpu.pipeline_mode<synchronous>, transform_indices = @transform_1, window_bounds = array<i64: 16, 64>}, {pipeline_mode = #tpu.pipeline_mode<synchronous>, transform_indices = @transform_2, window_bounds = array<i64: 1, 64>}, {transform_indices = @transform_3, window_bounds = array<i64: 128, 64>}]} {
    %c0 = arith.constant 0 : index
    %c0_0 = arith.constant 0 : index
    %0 = vector.load %arg1[%c0, %c0_0] : memref<128x16xbf16, #tpu.memory_space<vmem>>, vector<128x16xbf16>
    %c0_1 = arith.constant 0 : index
    %c0_2 = arith.constant 0 : index
    %1 = vector.load %arg2[%c0_1, %c0_2] : memref<16x64xbf16, #tpu.memory_space<vmem>>, vector<16x64xbf16>
    %cst = arith.constant dense<0.000000e+00> : vector<128x64xf32>
    %2 = tpu.matmul %0, %1, %cst {dimension_numbers = #tpu.dot_dimension_numbers<[1], [0], [0], [1], [0, 0, 1, 1], [], []>} : vector<128x16xbf16>, vector<16x64xbf16>, vector<128x64xf32> -> vector<128x64xf32>
    %c0_3 = arith.constant 0 : index
    %c0_4 = arith.constant 0 : index
    %3 = vector.load %arg3[%c0_3, %c0_4] : memref<1x64xf32, #tpu.memory_space<vmem>>, vector<1x64xf32>
    %4 = vector.broadcast %3 : vector<1x64xf32> to vector<128x64xf32>
    %5 = arith.addf %2, %4 : vector<128x64xf32>
    %6 = arith.truncf %5 : vector<128x64xf32> to vector<128x64xbf16>
    %c0_5 = arith.constant 0 : index
    %c0_6 = arith.constant 0 : index
    %7 = vector.load %arg4[%c0_5, %c0_6] : memref<128x64xbf16, #tpu.memory_space<vmem>>, vector<128x64xbf16>
    tpu.vector_store %arg4[%c0_5, %c0_6], %6 {strides = array<i32>} : memref<128x64xbf16, #tpu.memory_space<vmem>>, vector<128x64xbf16>,
    return
  }
  func.func @transform_0(%arg0: i32) -> (i32, i32) {
    %c0_i32 = arith.constant 0 : i32
    %c0_i32_0 = arith.constant 0 : i32
    return %arg0, %c0_i32 : i32, i32
  }
  func.func @transform_1(%arg0: i32) -> (i32, i32) {
    %c0_i32 = arith.constant 0 : i32
    %c0_i32_0 = arith.constant 0 : i32
    %c0_i32_1 = arith.constant 0 : i32
    return %c0_i32, %c0_i32_0 : i32, i32
  }
  func.func @transform_2(%arg0: i32) -> (i32, i32) {
    %c0_i32 = arith.constant 0 : i32
    %c0_i32_0 = arith.constant 0 : i32
    %c0_i32_1 = arith.constant 0 : i32
    return %c0_i32, %c0_i32_0 : i32, i32
  }
  func.func @transform_3(%arg0: i32) -> (i32, i32) {
    %c0_i32 = arith.constant 0 : i32
    %c0_i32_0 = arith.constant 0 : i32
    return %arg0, %c0_i32 : i32, i32
  }
}

</mosaic_0001>

<llo_original>
// kernel: tpu_custom_call.1
$region0: #{tpu_custom_call.1}
  #allocation0 [shape = 'u32[]', space=smem, size = 0x4, offset = 0x4, fixed_abs, tag = 'smem constant byte address 0x4 - core index']
  #allocation1 [shape = 'u32[144,128]{1,0:T(1,128)}', space=vmem, size = 0x12000, scoped, tag = 'internal scratch']
  %s0 = inlined_call_operand.vmem [shape: bf16[128,16], index: 0, kind: input, shape index: {}]
  %s1 = inlined_call_operand.vmem [shape: bf16[16,64], index: 1, kind: input, shape index: {}]
  %s2 = inlined_call_operand.vmem [shape: f32[1,64], index: 2, kind: input, shape index: {}]
  %s3 = inlined_call_operand.vmem [shape: bf16[128,64], index: 3, kind: output, shape index: {}]
  %s4 = sld [smem:[#allocation0]]
  $region22: #{tpu_custom_call.1} parent=0
    _
  %s6 = ssub.s32 1, %s4
  %s7 = scalar_select 0, %s6, %s4
  // Predicated region
  $region2: #{tpu_custom_call.1} parent=0 // pred_check
    _
  $region3: #{tpu_custom_call.1} parent=0 // pred_check_branch
    %9 = sbr.rel (0) target = $region5
  $region4: #{tpu_custom_call.1} parent=0 // pred_region
    _
  $region5: #{tpu_custom_call.1} parent=0 // pred_fallthru
    _
  // Predicated region
  $region6: #{tpu_custom_call.1} parent=0 // pred_check
    _
  $region7: #{tpu_custom_call.1} parent=0 // pred_check_branch
    %11 = sbr.rel (0) target = $region9
  $region8: #{tpu_custom_call.1} parent=0 // pred_region
    _
  $region9: #{tpu_custom_call.1} parent=0 // pred_fallthru
    _
  // Predicated region
  $region10: #{tpu_custom_call.1} parent=0 // pred_check
    _
  $region11: #{tpu_custom_call.1} parent=0 // pred_check_branch
    %13 = sbr.rel (0) target = $region13
  $region12: #{tpu_custom_call.1} parent=0 // pred_region
    _
  $region13: #{tpu_custom_call.1} parent=0 // pred_fallthru
    _
  %v15 = vld [vmem:[%s0] sm:$0xf]
  %v16 = vld [vmem:[%s0 + $0x4] sm:$0xf]
  %v17 = vld [vmem:[%s0 + $0x8] sm:$0xf]
  %v18 = vld [vmem:[%s0 + $0xc] sm:$0xf]
  %v19 = vld [vmem:[%s0 + $0x10] sm:$0xf]
  %v20 = vld [vmem:[%s0 + $0x14] sm:$0xf]
  %v21 = vld [vmem:[%s0 + $0x18] sm:$0xf]
  %v22 = vld [vmem:[%s0 + $0x1c] sm:$0xf]
  %v23 = vld [vmem:[%s0 + $0x20] sm:$0xf]
  %v24 = vld [vmem:[%s0 + $0x24] sm:$0xf]
  %v25 = vld [vmem:[%s0 + $0x28] sm:$0xf]
  %v26 = vld [vmem:[%s0 + $0x2c] sm:$0xf]
  %v27 = vld [vmem:[%s0 + $0x30] sm:$0xf]
  %v28 = vld [vmem:[%s0 + $0x34] sm:$0xf]
  %v29 = vld [vmem:[%s0 + $0x38] sm:$0xf]
  %v30 = vld [vmem:[%s0 + $0x3c] sm:$0xf]
  %v31 = vld [vmem:[%s1] sm:$0xf]
  %v32 = vld [vmem:[%s1 + $0x4] sm:$0xf]
  %v33 = vld [vmem:[%s2] sm:$0x1]
  %v35 = vlaneseq
  %v36 = vshrl.u32 %v35, 7
  %v37 = vsub.s32 0, %v36
  %v38 = vrot.slane %v33, %v37
  %v56 = vunpack.c.l.b16 %v15
  %v57 = vunpack.c.l.b16 %v16
  %v58 = vunpack.c.l.b16 %v17
  %v59 = vunpack.c.l.b16 %v18
  %v60 = vunpack.c.l.b16 %v19
  %v61 = vunpack.c.l.b16 %v20
  %v62 = vunpack.c.l.b16 %v21
  %v63 = vunpack.c.l.b16 %v22
  %v64 = vunpack.c.l.b16 %v23
  %v65 = vunpack.c.l.b16 %v24
  %v66 = vunpack.c.l.b16 %v25
  %v67 = vunpack.c.l.b16 %v26
  %v68 = vunpack.c.l.b16 %v27
  %v69 = vunpack.c.l.b16 %v28
  %v70 = vunpack.c.l.b16 %v29
  %v71 = vunpack.c.l.b16 %v30
  %v72 = vpack.c.b16 %v57, %v56
  %v73 = vpack.c.b16 %v59, %v58
  %v74 = vpack.c.b16 %v61, %v60
  %v75 = vpack.c.b16 %v63, %v62
  %v76 = vpack.c.b16 %v65, %v64
  %v77 = vpack.c.b16 %v67, %v66
  %v78 = vpack.c.b16 %v69, %v68
  %v79 = vpack.c.b16 %v71, %v70
  %v82 = vunpack.c.l.b16 %v31
  %v83 = vunpack.c.l.b16 %v32
  %v84 = vpack.c.b16 %v83, %v82
  %vm86 = vcmask 130048
  %v88 = vsel %vm86, %v72, 0
  %v91 = vsel %vm86, %v73, 0
  %v94 = vsel %vm86, %v74, 0
  %v97 = vsel %vm86, %v75, 0
  %v100 = vsel %vm86, %v76, 0
  %v103 = vsel %vm86, %v77, 0
  %v106 = vsel %vm86, %v78, 0
  %v109 = vsel %vm86, %v79, 0
  %111 = vmatprep.subr.bf16.mxu0 0
  %112 = vmatpush1.bf16.msra.mxu0 %v84
  %113 = vmatprep.subr.bf16.mxu0 0
  %114 = vmatpush1.bf16.msra.mxu0 0
  %115 = vmatprep.subr.bf16.mxu0 0
  %116 = vmatpush1.bf16.msra.mxu0 0
  %117 = vmatprep.subr.bf16.mxu0 0
  %118 = vmatpush1.bf16.msra.mxu0 0
  %119 = vmatprep.subr.bf16.mxu0 0
  %120 = vmatpush1.bf16.msra.mxu0 0
  %121 = vmatprep.subr.bf16.mxu0 0
  %122 = vmatpush1.bf16.msra.mxu0 0
  %123 = vmatprep.subr.bf16.mxu0 0
  %124 = vmatpush1.bf16.msra.mxu0 0
  %125 = vmatprep.subr.bf16.mxu0 0
  %126 = vmatpush1.bf16.msra.mxu0 0
  %127 = vmatprep.subr.bf16.mxu0 0
  %128 = vmatpush1.bf16.msra.mxu0 0
  %129 = vmatprep.subr.bf16.mxu0 0
  %130 = vmatpush1.bf16.msra.mxu0 0
  %131 = vmatprep.subr.bf16.mxu0 0
  %132 = vmatpush1.bf16.msra.mxu0 0
  %133 = vmatprep.subr.bf16.mxu0 0
  %134 = vmatpush1.bf16.msra.mxu0 0
  %135 = vmatprep.subr.bf16.mxu0 0
  %136 = vmatpush1.bf16.msra.mxu0 0
  %137 = vmatprep.subr.bf16.mxu0 0
  %138 = vmatpush1.bf16.msra.mxu0 0
  %139 = vmatprep.subr.bf16.mxu0 0
  %140 = vmatpush1.bf16.msra.mxu0 0
  %141 = vmatprep.subr.bf16.mxu0 0
  %142 = vmatpush1.bf16.msra.mxu0 0
  %143 = vmatprep.mubr.bf16.mxu0 0
  %144 = vmatmul.mubr.bf16.gmra.mrb[0].mxu0 %v88
  %v145 = vpop.f32.mrb[0].mxu0
  %v146 = vadd.f32 %v38, %v145
  %v147 = vpop.f32.mrb[0].mxu0
  %v148 = vpop.f32.mrb[0].mxu0
  %v149 = vadd.f32 %v38, %v148
  %v150 = vpop.f32.mrb[0].mxu0
  %151 = vmatprep.mubr.bf16.mxu0 0
  %152 = vmatmul.mubr.bf16.gmra.mrb[0].mxu0 %v91
  %v153 = vpop.f32.mrb[0].mxu0
  %v154 = vadd.f32 %v38, %v153
  %v155 = vpop.f32.mrb[0].mxu0
  %v156 = vpop.f32.mrb[0].mxu0
  %v157 = vadd.f32 %v38, %v156
  %v158 = vpop.f32.mrb[0].mxu0
  %159 = vmatprep.mubr.bf16.mxu0 0
  %160 = vmatmul.mubr.bf16.gmra.mrb[0].mxu0 %v94
  %v161 = vpop.f32.mrb[0].mxu0
  %v162 = vadd.f32 %v38, %v161
  %v163 = vpop.f32.mrb[0].mxu0
  %v164 = vpop.f32.mrb[0].mxu0
  %v165 = vadd.f32 %v38, %v164
  %v166 = vpop.f32.mrb[0].mxu0
  %167 = vmatprep.mubr.bf16.mxu0 0
  %168 = vmatmul.mubr.bf16.gmra.mrb[0].mxu0 %v97
  %v169 = vpop.f32.mrb[0].mxu0
  %v170 = vadd.f32 %v38, %v169
  %v171 = vpop.f32.mrb[0].mxu0
  %v172 = vpop.f32.mrb[0].mxu0
  %v173 = vadd.f32 %v38, %v172
  %v174 = vpop.f32.mrb[0].mxu0
  %175 = vmatprep.mubr.bf16.mxu0 0
  %176 = vmatmul.mubr.bf16.gmra.mrb[0].mxu0 %v100
  %v177 = vpop.f32.mrb[0].mxu0
  %v178 = vadd.f32 %v38, %v177
  %v179 = vpop.f32.mrb[0].mxu0
  %v180 = vpop.f32.mrb[0].mxu0
  %v181 = vadd.f32 %v38, %v180
  %v182 = vpop.f32.mrb[0].mxu0
  %183 = vmatprep.mubr.bf16.mxu0 0
  %184 = vmatmul.mubr.bf16.gmra.mrb[0].mxu0 %v103
  %v185 = vpop.f32.mrb[0].mxu0
  %v186 = vadd.f32 %v38, %v185
  %v187 = vpop.f32.mrb[0].mxu0
  %v188 = vpop.f32.mrb[0].mxu0
  %v189 = vadd.f32 %v38, %v188
  %v190 = vpop.f32.mrb[0].mxu0
  %191 = vmatprep.mubr.bf16.mxu0 0
  %192 = vmatmul.mubr.bf16.gmra.mrb[0].mxu0 %v106
  %v193 = vpop.f32.mrb[0].mxu0
  %v194 = vadd.f32 %v38, %v193
  %v195 = vpop.f32.mrb[0].mxu0
  %v196 = vpop.f32.mrb[0].mxu0
  %v197 = vadd.f32 %v38, %v196
  %v198 = vpop.f32.mrb[0].mxu0
  %199 = vmatprep.mubr.bf16.mxu0 0
  %200 = vmatmul.mubr.bf16.gmra.mrb[0].mxu0 %v109
  %v201 = vpop.f32.mrb[0].mxu0
  %v202 = vadd.f32 %v38, %v201
  %v203 = vpop.f32.mrb[0].mxu0
  %v204 = vpop.f32.mrb[0].mxu0
  %v205 = vadd.f32 %v38, %v204
  %v206 = vpop.f32.mrb[0].mxu0
  %207 = vdwg.mxu0
  %v208 = vpack.c.bf16 %v149, %v146
  %v209 = vpack.c.bf16 %v157, %v154
  %v210 = vpack.c.bf16 %v165, %v162
  %v211 = vpack.c.bf16 %v173, %v170
  %v212 = vpack.c.bf16 %v181, %v178
  %v213 = vpack.c.bf16 %v189, %v186
  %v214 = vpack.c.bf16 %v197, %v194
  %v215 = vpack.c.bf16 %v205, %v202
  %v224 = vunpack.c.l.b16 %v208
  %v225 = vunpack.c.h.b16 %v208
  %v226 = vunpack.c.l.b16 %v209
  %v227 = vunpack.c.h.b16 %v209
  %v228 = vunpack.c.l.b16 %v210
  %v229 = vunpack.c.h.b16 %v210
  %v230 = vunpack.c.l.b16 %v211
  %v231 = vunpack.c.h.b16 %v211
  %v232 = vunpack.c.l.b16 %v212
  %v233 = vunpack.c.h.b16 %v212
  %v234 = vunpack.c.l.b16 %v213
  %v235 = vunpack.c.h.b16 %v213
  %v236 = vunpack.c.l.b16 %v214
  %v237 = vunpack.c.h.b16 %v214
  %v238 = vunpack.c.l.b16 %v215
  %v239 = vunpack.c.h.b16 %v215
  %v240 = vpack.c.b16 %v224, %v224
  %v241 = vpack.c.b16 %v225, %v225
  %v242 = vpack.c.b16 %v226, %v226
  %v243 = vpack.c.b16 %v227, %v227
  %v244 = vpack.c.b16 %v228, %v228
  %v245 = vpack.c.b16 %v229, %v229
  %v246 = vpack.c.b16 %v230, %v230
  %v247 = vpack.c.b16 %v231, %v231
  %v248 = vpack.c.b16 %v232, %v232
  %v249 = vpack.c.b16 %v233, %v233
  %v250 = vpack.c.b16 %v234, %v234
  %v251 = vpack.c.b16 %v235, %v235
  %v252 = vpack.c.b16 %v236, %v236
  %v253 = vpack.c.b16 %v237, %v237
  %v254 = vpack.c.b16 %v238, %v238
  %v255 = vpack.c.b16 %v239, %v239
  %vm272 = vcmask 519168
  %273 = vst.msk [vmem:[%s3] sm:$0xf] %vm272, %v240
  %274 = vst.msk [vmem:[%s3 + $0x4] sm:$0xf] %vm272, %v241
  %275 = vst.msk [vmem:[%s3 + $0x8] sm:$0xf] %vm272, %v242
  %276 = vst.msk [vmem:[%s3 + $0xc] sm:$0xf] %vm272, %v243
  %277 = vst.msk [vmem:[%s3 + $0x10] sm:$0xf] %vm272, %v244
  %278 = vst.msk [vmem:[%s3 + $0x14] sm:$0xf] %vm272, %v245
  %279 = vst.msk [vmem:[%s3 + $0x18] sm:$0xf] %vm272, %v246
  %280 = vst.msk [vmem:[%s3 + $0x1c] sm:$0xf] %vm272, %v247
  %281 = vst.msk [vmem:[%s3 + $0x20] sm:$0xf] %vm272, %v248
  %282 = vst.msk [vmem:[%s3 + $0x24] sm:$0xf] %vm272, %v249
  %283 = vst.msk [vmem:[%s3 + $0x28] sm:$0xf] %vm272, %v250
  %284 = vst.msk [vmem:[%s3 + $0x2c] sm:$0xf] %vm272, %v251
  %285 = vst.msk [vmem:[%s3 + $0x30] sm:$0xf] %vm272, %v252
  %286 = vst.msk [vmem:[%s3 + $0x34] sm:$0xf] %vm272, %v253
  %287 = vst.msk [vmem:[%s3 + $0x38] sm:$0xf] %vm272, %v254
  %288 = vst.msk [vmem:[%s3 + $0x3c] sm:$0xf] %vm272, %v255
  // Predicated region
  $region14: #{tpu_custom_call.1} parent=0 // pred_check
    _
  $region15: #{tpu_custom_call.1} parent=0 // pred_check_branch
    %290 = sbr.rel (0) target = $region17
  $region16: #{tpu_custom_call.1} parent=0 // pred_region
    _
  $region17: #{tpu_custom_call.1} parent=0 // pred_fallthru
    _
  // Predicated region
  $region18: #{tpu_custom_call.1} parent=0 // pred_check
    _
  $region19: #{tpu_custom_call.1} parent=0 // pred_check_branch
    %292 = sbr.rel (0) target = $region21
  $region20: #{tpu_custom_call.1} parent=0 // pred_region
    _
  $region21: #{tpu_custom_call.1} parent=0 // pred_fallthru
    _

</llo_original>
